<compile_context>
chip_gen: v6e
topology: v6e:2x2x1
jax: 0.10.0
libtpu: 0.0.40
codegen_flags: <defaults>
</compile_context>

<pallas_src>
import jax
import jax.numpy as jnp
from jax import lax
from jax.experimental import pallas as pl
from jax.experimental.pallas import tpu as pltpu


def _agnn_kernel(meta_ref, beta_ref, x_ref, w_ref, out_ref):
  """Whole AGNN forward on one (small) graph batch resident in VMEM.

  meta_ref : SMEM int32 (2*E + N,)  = [src(E), tgt(E), batch(N)]
  beta_ref : SMEM f32   (2,)        = [beta_prop1_fixed, beta_prop2_learnable]
  x_ref    : VMEM f32   (N, F_in)
  w_ref    : VMEM f32   (F_in + F_hid + 2, F_hid) packed [w1; b1; w2(pad); b2(pad)]
  out_ref  : VMEM f32   (G, F_out)
  """
  f32 = jnp.float32
  big_neg = f32(-1e30)

  n, f_in = x_ref.shape
  f_hid = w_ref.shape[1]
  n_graphs, f_out = out_ref.shape
  n_edges = (meta_ref.shape[0] - n) // 2

  # --- graph structure built IN-KERNEL from SMEM scalars (no host/XLA scatter) ---
  row = lax.broadcasted_iota(jnp.int32, (n, n), 0)   # target node index
  col = lax.broadcasted_iota(jnp.int32, (n, n), 1)   # source node index
  adj0 = (row == col).astype(f32)                    # self loops (AGNNConv default)

  def add_edge(e, adj):
    src = meta_ref[e]
    tgt = meta_ref[n_edges + e]
    hit = jnp.logical_and(row == tgt, col == src)
    return jnp.maximum(adj, hit.astype(f32))

  adj = lax.fori_loop(0, n_edges, add_edge, adj0, unroll=True)   # (N, N) 0/1 mask

  # Pooling bias: 0 where node i belongs to graph g, -1e30 elsewhere
  # (additive mask; replaces the previous 3-D jnp.where / vsel).
  p_row = lax.broadcasted_iota(jnp.int32, (n_graphs, n), 0)
  p_col = lax.broadcasted_iota(jnp.int32, (n_graphs, n), 1)

  def add_node(i, pb):
    g = meta_ref[2 * n_edges + i]
    hit = jnp.logical_and(p_row == g, p_col == i)
    return jnp.where(hit, f32(0.0), pb)

  pool_bias = lax.fori_loop(0, n, add_node,
                            jnp.full((n_graphs, n), big_neg, f32), unroll=True)

  # --- weights sliced out of the single packed slab (static slices, zero cost) ---
  w = w_ref[...]
  w1 = w[0:f_in, :]                                     # (F_in, F_hid)
  b1 = w[f_in:f_in + 1, :]                              # (1, F_hid)
  w2 = w[f_in + 1:f_in + 1 + f_hid, 0:f_out]            # (F_hid, F_out)
  b2 = w[f_in + 1 + f_hid:f_in + 2 + f_hid, 0:f_out]    # (1, F_out)

  # --- lin1 + ReLU ------------------------------------------------------------
  h = jnp.dot(x_ref[...], w1, preferred_element_type=f32) + b1
  h = jnp.maximum(h, 0.0)                               # (N, F_hid)

  # --- AGNNConv propagation (f32 throughout: at N=8 the matmuls are
  #     fill/drain-latency bound, so bf16 casts are pure VPU overhead) --------
  def propagate(h, beta):
    # F.normalize(h, p=2, dim=-1), eps=1e-12  -> rsqrt on the EUP.
    sq = jnp.sum(h * h, axis=-1, keepdims=True)
    hn = h * lax.rsqrt(jnp.maximum(sq, f32(1e-24)))
    # beta folded into the (N, F_hid) operand instead of an N^2 post-scale.
    s = jnp.einsum("if,jf->ij", hn * beta, hn,
                   preferred_element_type=f32)          # (N, N) cosine * beta
    # No additive -inf mask: |s| <= |beta| and every row keeps its self-loop
    # diagonal, so the global row max is a valid shift and exp never underflows.
    m = jnp.max(s, axis=-1, keepdims=True)
    e = jnp.exp(s - m) * adj                            # multiplicative edge mask
    denom = jnp.sum(e, axis=-1, keepdims=True)
    # Approx EUP reciprocal: ~1e-3 rel error in alpha, intentional
    # (inference-grade). +1e-30 guards an all-zero row if self loops are dropped.
    inv = pl.reciprocal(denom + f32(1e-30), approx=True)
    alpha = e * inv                                     # row softmax over neighbors
    return jnp.dot(alpha, h, preferred_element_type=f32)   # (N, F_hid)

  h = propagate(h, beta_ref[0])   # prop1 (fixed beta buffer = 1)
  h = propagate(h, beta_ref[1])   # prop2 (learnable beta, init 1)

  # --- global_max_pool via additive bias -------------------------------------
  pooled = jnp.max(h[None, :, :] + pool_bias[:, :, None], axis=1)   # (G, F_hid)

  # --- lin2 + log_softmax(dim=1) ----------------------------------------------
  logits = jnp.dot(pooled, w2, preferred_element_type=f32) + b2     # (G, F_out)
  z = logits - jnp.max(logits, axis=-1, keepdims=True)
  out_ref[...] = z - jnp.log(jnp.sum(jnp.exp(z), axis=-1, keepdims=True))


def pack_params(params):
  """One-time packing of lin1/lin2 into a single f32 slab (one VMEM DMA)."""
  w1, b1, beta, w2, b2 = params
  f_in, f_hid = w1.shape
  f_out = w2.shape[1]
  slab = jnp.zeros((f_in + f_hid + 2, f_hid), jnp.float32)
  slab = slab.at[0:f_in, :].set(w1)
  slab = slab.at[f_in, :].set(b1.reshape(-1))
  slab = slab.at[f_in + 1:f_in + 1 + f_hid, 0:f_out].set(w2)
  slab = slab.at[f_in + 1 + f_hid, 0:f_out].set(b2.reshape(-1))
  return slab, beta.astype(jnp.float32)


def pack_graph(edge_index, batch_index):
  """One-time packing of the static graph structure into one SMEM int32 array."""
  src = edge_index[0].astype(jnp.int32)
  tgt = edge_index[1].astype(jnp.int32)
  return jnp.concatenate([src, tgt, batch_index.astype(jnp.int32)])


def agnn_forward(x, graph_meta, beta, wslab, num_graphs, num_classes):
  """Thin wrapper: nothing but the fused pallas_call on the step critical path."""
  n, f_in = x.shape
  f_hid = wslab.shape[1]

  vmem = pl.BlockSpec(memory_space=pltpu.MemorySpace.VMEM)
  smem = pl.BlockSpec(memory_space=pltpu.MemorySpace.SMEM)

  flops = (2 * n * f_in * f_hid                 # lin1
           + 8 * n * n * f_hid                  # 2 x (similarity + aggregation)
           + 2 * num_graphs * f_hid * num_classes)
  transcendentals = 2 * (n * n + 2 * n) + 2 * num_graphs * num_classes
  bytes_accessed = (x.size + wslab.size + beta.size + graph_meta.size
                    + num_graphs * num_classes) * 4

  return pl.pallas_call(
      _agnn_kernel,
      out_shape=jax.ShapeDtypeStruct((num_graphs, num_classes), jnp.float32),
      in_specs=[smem, smem, vmem, vmem],
      out_specs=vmem,
      cost_estimate=pl.CostEstimate(flops=int(flops),
                                    transcendentals=int(transcendentals),
                                    bytes_accessed=int(bytes_accessed)),
  )(graph_meta, beta, x, wslab)


def init_params(key):
  """Deterministic init matching the module's parameter shapes."""
  k1, k2, k3, k4 = jax.random.split(key, 4)
  # lin1: Linear(8, 16); lin2: Linear(16, 2). Kernels stored as (in, out).
  lim1 = 1.0 / jnp.sqrt(8.0)
  w1 = jax.random.uniform(k1, (8, 16), jnp.float32, -lim1, lim1)
  b1 = jax.random.uniform(k2, (1, 16), jnp.float32, -lim1, lim1)
  lim2 = 1.0 / jnp.sqrt(16.0)
  w2 = jax.random.uniform(k3, (16, 2), jnp.float32, -lim2, lim2)
  b2 = jax.random.uniform(k4, (1, 2), jnp.float32, -lim2, lim2)
  # beta[0]: prop1 (fixed buffer = 1); beta[1]: prop2 (parameter, init 1).
  beta = jnp.array([1.0, 1.0], jnp.float32)
  return (w1, b1, beta, w2, b2)


def _agnn_reference(x, edge_index, batch_index, params, num_graphs):
  """Pure-JAX f32 reference of the same forward pass (sanity check)."""
  n = x.shape[0]
  adj = jnp.zeros((n, n), jnp.float32)
  adj = adj.at[edge_index[1], edge_index[0]].set(1.0)
  adj = adj.at[jnp.arange(n), jnp.arange(n)].set(1.0)
  pool = (batch_index[None, :] == jnp.arange(num_graphs)[:, None])

  w1, b1, beta, w2, b2 = params
  h = jnp.maximum(x @ w1 + b1, 0.0)

  def prop(h, b):
    hn = h / jnp.maximum(jnp.linalg.norm(h, axis=-1, keepdims=True), 1e-12)
    s = b * (hn @ hn.T)
    s = jnp.where(adj > 0, s, -1e30)
    e = jnp.where(adj > 0, jnp.exp(s - jnp.max(s, axis=-1, keepdims=True)), 0.0)
    a = e / jnp.sum(e, axis=-1, keepdims=True)
    return a @ h

  h = prop(h, beta[0])
  h = prop(h, beta[1])
  pooled = jnp.max(jnp.where(pool[:, :, None], h[None, :, :], -1e30), axis=1)
  logits = pooled @ w2 + b2
  return jax.nn.log_softmax(logits, axis=-1)


if __name__ == "__main__":
  key = jax.random.PRNGKey(0)
  kx, kp = jax.random.split(key)

  # Small graph batch: 2 graphs x 4 nodes, 8 input features per node.
  num_nodes, num_graphs, num_classes = 8, 2, 2
  x = jax.random.normal(kx, (num_nodes, 8), jnp.float32)
  # Edges inside each graph (PyG convention: row0=src, row1=tgt).
  src = jnp.array([0, 1, 1, 2, 2, 3, 0,   4, 5, 5, 6, 6, 7, 4], jnp.int32)
  tgt = jnp.array([1, 0, 2, 1, 3, 2, 3,   5, 4, 6, 5, 7, 6, 7], jnp.int32)
  edge_index = jnp.stack([src, tgt], axis=0)           # (2, 14)
  batch_index = jnp.array([0, 0, 0, 0, 1, 1, 1, 1], jnp.int32)

  params = init_params(kp)

  # One-time (per-topology / per-checkpoint) packing: OFF the step critical path.
  wslab, beta = pack_params(params)
  graph_meta = pack_graph(edge_index, batch_index)

  out = agnn_forward(x, graph_meta, beta, wslab, num_graphs, num_classes)
  out = jax.block_until_ready(out)

  assert out.shape == (num_graphs, num_classes)
  assert bool(jnp.all(jnp.isfinite(out)))

  # Tolerance covers the intentional approximate EUP reciprocal in the softmax.
  ref = _agnn_reference(x, edge_index, batch_index, params, num_graphs)
  assert bool(jnp.allclose(out, ref, atol=2e-2, rtol=2e-2))

  print("KERNEL_OK")
</pallas_src>

<mosaic_0001>
module attributes {stable_mosaic.version = 11 : i64} {
  func.func @_agnn_kernel(%arg0: memref<36xi32, #tpu.memory_space<smem>>, %arg1: memref<2xf32, #tpu.memory_space<smem>>, %arg2: memref<8x8xf32, #tpu.memory_space<vmem>>, %arg3: memref<26x16xf32, #tpu.memory_space<vmem>>, %arg4: memref<2x2xf32, #tpu.memory_space<vmem>>) attributes {dimension_semantics = [], scalar_prefetch = 0 : i64, scratch_operands = 0 : i64, tpu.core_type = #tpu.core_type<tc>} {
    %0 = tpu.iota {dimensions = array<i32: 0>} : vector<8x8xi32>
    %1 = tpu.iota {dimensions = array<i32: 1>} : vector<8x8xi32>
    %2 = arith.cmpi eq, %0, %1 : vector<8x8xi32>
    %3 = arith.extui %2 : vector<8x8xi1> to vector<8x8xi32>
    %4 = arith.sitofp %3 : vector<8x8xi32> to vector<8x8xf32>
    %c0_i32 = arith.constant 0 : i32
    %5 = arith.index_cast %c0_i32 : i32 to index
    %6 = memref.load %arg0[%5] : memref<36xi32, #tpu.memory_space<smem>>
    %c14_i32 = arith.constant 14 : i32
    %7 = arith.addi %c14_i32, %c0_i32 : i32
    %8 = arith.index_cast %7 : i32 to index
    %9 = memref.load %arg0[%8] : memref<36xi32, #tpu.memory_space<smem>>
    %10 = vector.broadcast %9 : i32 to vector<8x8xi32>
    %11 = arith.cmpi eq, %0, %10 : vector<8x8xi32>
    %12 = vector.broadcast %6 : i32 to vector<8x8xi32>
    %13 = arith.cmpi eq, %1, %12 : vector<8x8xi32>
    %14 = arith.andi %11, %13 : vector<8x8xi1>
    %15 = arith.extui %14 : vector<8x8xi1> to vector<8x8xi32>
    %16 = arith.sitofp %15 : vector<8x8xi32> to vector<8x8xf32>
    %17 = arith.maximumf %4, %16 : vector<8x8xf32>
    %c1_i32 = arith.constant 1 : i32
    %18 = arith.index_cast %c1_i32 : i32 to index
    %19 = memref.load %arg0[%18] : memref<36xi32, #tpu.memory_space<smem>>
    %c14_i32_0 = arith.constant 14 : i32
    %20 = arith.addi %c14_i32_0, %c1_i32 : i32
    %21 = arith.index_cast %20 : i32 to index
    %22 = memref.load %arg0[%21] : memref<36xi32, #tpu.memory_space<smem>>
    %23 = vector.broadcast %22 : i32 to vector<8x8xi32>
    %24 = arith.cmpi eq, %0, %23 : vector<8x8xi32>
    %25 = vector.broadcast %19 : i32 to vector<8x8xi32>
    %26 = arith.cmpi eq, %1, %25 : vector<8x8xi32>
    %27 = arith.andi %24, %26 : vector<8x8xi1>
    %28 = arith.extui %27 : vector<8x8xi1> to vector<8x8xi32>
    %29 = arith.sitofp %28 : vector<8x8xi32> to vector<8x8xf32>
    %30 = arith.maximumf %17, %29 : vector<8x8xf32>
    %c2_i32 = arith.constant 2 : i32
    %31 = arith.index_cast %c2_i32 : i32 to index
    %32 = memref.load %arg0[%31] : memref<36xi32, #tpu.memory_space<smem>>
    %c14_i32_1 = arith.constant 14 : i32
    %33 = arith.addi %c14_i32_1, %c2_i32 : i32
    %34 = arith.index_cast %33 : i32 to index
    %35 = memref.load %arg0[%34] : memref<36xi32, #tpu.memory_space<smem>>
    %36 = vector.broadcast %35 : i32 to vector<8x8xi32>
    %37 = arith.cmpi eq, %0, %36 : vector<8x8xi32>
    %38 = vector.broadcast %32 : i32 to vector<8x8xi32>
    %39 = arith.cmpi eq, %1, %38 : vector<8x8xi32>
    %40 = arith.andi %37, %39 : vector<8x8xi1>
    %41 = arith.extui %40 : vector<8x8xi1> to vector<8x8xi32>
    %42 = arith.sitofp %41 : vector<8x8xi32> to vector<8x8xf32>
    %43 = arith.maximumf %30, %42 : vector<8x8xf32>
    %c3_i32 = arith.constant 3 : i32
    %44 = arith.index_cast %c3_i32 : i32 to index
    %45 = memref.load %arg0[%44] : memref<36xi32, #tpu.memory_space<smem>>
    %c14_i32_2 = arith.constant 14 : i32
    %46 = arith.addi %c14_i32_2, %c3_i32 : i32
    %47 = arith.index_cast %46 : i32 to index
    %48 = memref.load %arg0[%47] : memref<36xi32, #tpu.memory_space<smem>>
    %49 = vector.broadcast %48 : i32 to vector<8x8xi32>
    %50 = arith.cmpi eq, %0, %49 : vector<8x8xi32>
    %51 = vector.broadcast %45 : i32 to vector<8x8xi32>
    %52 = arith.cmpi eq, %1, %51 : vector<8x8xi32>
    %53 = arith.andi %50, %52 : vector<8x8xi1>
    %54 = arith.extui %53 : vector<8x8xi1> to vector<8x8xi32>
    %55 = arith.sitofp %54 : vector<8x8xi32> to vector<8x8xf32>
    %56 = arith.maximumf %43, %55 : vector<8x8xf32>
    %c4_i32 = arith.constant 4 : i32
    %57 = arith.index_cast %c4_i32 : i32 to index
    %58 = memref.load %arg0[%57] : memref<36xi32, #tpu.memory_space<smem>>
    %c14_i32_3 = arith.constant 14 : i32
    %59 = arith.addi %c14_i32_3, %c4_i32 : i32
    %60 = arith.index_cast %59 : i32 to index
    %61 = memref.load %arg0[%60] : memref<36xi32, #tpu.memory_space<smem>>
    %62 = vector.broadcast %61 : i32 to vector<8x8xi32>
    %63 = arith.cmpi eq, %0, %62 : vector<8x8xi32>
    %64 = vector.broadcast %58 : i32 to vector<8x8xi32>
    %65 = arith.cmpi eq, %1, %64 : vector<8x8xi32>
    %66 = arith.andi %63, %65 : vector<8x8xi1>
    %67 = arith.extui %66 : vector<8x8xi1> to vector<8x8xi32>
    %68 = arith.sitofp %67 : vector<8x8xi32> to vector<8x8xf32>
    %69 = arith.maximumf %56, %68 : vector<8x8xf32>
    %c5_i32 = arith.constant 5 : i32
    %70 = arith.index_cast %c5_i32 : i32 to index
    %71 = memref.load %arg0[%70] : memref<36xi32, #tpu.memory_space<smem>>
    %c14_i32_4 = arith.constant 14 : i32
    %72 = arith.addi %c14_i32_4, %c5_i32 : i32
    %73 = arith.index_cast %72 : i32 to index
    %74 = memref.load %arg0[%73] : memref<36xi32, #tpu.memory_space<smem>>
    %75 = vector.broadcast %74 : i32 to vector<8x8xi32>
    %76 = arith.cmpi eq, %0, %75 : vector<8x8xi32>
    %77 = vector.broadcast %71 : i32 to vector<8x8xi32>
    %78 = arith.cmpi eq, %1, %77 : vector<8x8xi32>
    %79 = arith.andi %76, %78 : vector<8x8xi1>
    %80 = arith.extui %79 : vector<8x8xi1> to vector<8x8xi32>
    %81 = arith.sitofp %80 : vector<8x8xi32> to vector<8x8xf32>
    %82 = arith.maximumf %69, %81 : vector<8x8xf32>
    %c6_i32 = arith.constant 6 : i32
    %83 = arith.index_cast %c6_i32 : i32 to index
    %84 = memref.load %arg0[%83] : memref<36xi32, #tpu.memory_space<smem>>
    %c14_i32_5 = arith.constant 14 : i32
    %85 = arith.addi %c14_i32_5, %c6_i32 : i32
    %86 = arith.index_cast %85 : i32 to index
    %87 = memref.load %arg0[%86] : memref<36xi32, #tpu.memory_space<smem>>
    %88 = vector.broadcast %87 : i32 to vector<8x8xi32>
    %89 = arith.cmpi eq, %0, %88 : vector<8x8xi32>
    %90 = vector.broadcast %84 : i32 to vector<8x8xi32>
    %91 = arith.cmpi eq, %1, %90 : vector<8x8xi32>
    %92 = arith.andi %89, %91 : vector<8x8xi1>
    %93 = arith.extui %92 : vector<8x8xi1> to vector<8x8xi32>
    %94 = arith.sitofp %93 : vector<8x8xi32> to vector<8x8xf32>
    %95 = arith.maximumf %82, %94 : vector<8x8xf32>
    %c7_i32 = arith.constant 7 : i32
    %96 = arith.index_cast %c7_i32 : i32 to index
    %97 = memref.load %arg0[%96] : memref<36xi32, #tpu.memory_space<smem>>
    %c14_i32_6 = arith.constant 14 : i32
    %98 = arith.addi %c14_i32_6, %c7_i32 : i32
    %99 = arith.index_cast %98 : i32 to index
    %100 = memref.load %arg0[%99] : memref<36xi32, #tpu.memory_space<smem>>
    %101 = vector.broadcast %100 : i32 to vector<8x8xi32>
    %102 = arith.cmpi eq, %0, %101 : vector<8x8xi32>
    %103 = vector.broadcast %97 : i32 to vector<8x8xi32>
    %104 = arith.cmpi eq, %1, %103 : vector<8x8xi32>
    %105 = arith.andi %102, %104 : vector<8x8xi1>
    %106 = arith.extui %105 : vector<8x8xi1> to vector<8x8xi32>
    %107 = arith.sitofp %106 : vector<8x8xi32> to vector<8x8xf32>
    %108 = arith.maximumf %95, %107 : vector<8x8xf32>
    %c8_i32 = arith.constant 8 : i32
    %109 = arith.index_cast %c8_i32 : i32 to index
    %110 = memref.load %arg0[%109] : memref<36xi32, #tpu.memory_space<smem>>
    %c14_i32_7 = arith.constant 14 : i32
    %111 = arith.addi %c14_i32_7, %c8_i32 : i32
    %112 = arith.index_cast %111 : i32 to index
    %113 = memref.load %arg0[%112] : memref<36xi32, #tpu.memory_space<smem>>
    %114 = vector.broadcast %113 : i32 to vector<8x8xi32>
    %115 = arith.cmpi eq, %0, %114 : vector<8x8xi32>
    %116 = vector.broadcast %110 : i32 to vector<8x8xi32>
    %117 = arith.cmpi eq, %1, %116 : vector<8x8xi32>
    %118 = arith.andi %115, %117 : vector<8x8xi1>
    %119 = arith.extui %118 : vector<8x8xi1> to vector<8x8xi32>
    %120 = arith.sitofp %119 : vector<8x8xi32> to vector<8x8xf32>
    %121 = arith.maximumf %108, %120 : vector<8x8xf32>
    %c9_i32 = arith.constant 9 : i32
    %122 = arith.index_cast %c9_i32 : i32 to index
    %123 = memref.load %arg0[%122] : memref<36xi32, #tpu.memory_space<smem>>
    %c14_i32_8 = arith.constant 14 : i32
    %124 = arith.addi %c14_i32_8, %c9_i32 : i32
    %125 = arith.index_cast %124 : i32 to index
    %126 = memref.load %arg0[%125] : memref<36xi32, #tpu.memory_space<smem>>
    %127 = vector.broadcast %126 : i32 to vector<8x8xi32>
    %128 = arith.cmpi eq, %0, %127 : vector<8x8xi32>
    %129 = vector.broadcast %123 : i32 to vector<8x8xi32>
    %130 = arith.cmpi eq, %1, %129 : vector<8x8xi32>
    %131 = arith.andi %128, %130 : vector<8x8xi1>
    %132 = arith.extui %131 : vector<8x8xi1> to vector<8x8xi32>
    %133 = arith.sitofp %132 : vector<8x8xi32> to vector<8x8xf32>
    %134 = arith.maximumf %121, %133 : vector<8x8xf32>
    %c10_i32 = arith.constant 10 : i32
    %135 = arith.index_cast %c10_i32 : i32 to index
    %136 = memref.load %arg0[%135] : memref<36xi32, #tpu.memory_space<smem>>
    %c14_i32_9 = arith.constant 14 : i32
    %137 = arith.addi %c14_i32_9, %c10_i32 : i32
    %138 = arith.index_cast %137 : i32 to index
    %139 = memref.load %arg0[%138] : memref<36xi32, #tpu.memory_space<smem>>
    %140 = vector.broadcast %139 : i32 to vector<8x8xi32>
    %141 = arith.cmpi eq, %0, %140 : vector<8x8xi32>
    %142 = vector.broadcast %136 : i32 to vector<8x8xi32>
    %143 = arith.cmpi eq, %1, %142 : vector<8x8xi32>
    %144 = arith.andi %141, %143 : vector<8x8xi1>
    %145 = arith.extui %144 : vector<8x8xi1> to vector<8x8xi32>
    %146 = arith.sitofp %145 : vector<8x8xi32> to vector<8x8xf32>
    %147 = arith.maximumf %134, %146 : vector<8x8xf32>
    %c11_i32 = arith.constant 11 : i32
    %148 = arith.index_cast %c11_i32 : i32 to index
    %149 = memref.load %arg0[%148] : memref<36xi32, #tpu.memory_space<smem>>
    %c14_i32_10 = arith.constant 14 : i32
    %150 = arith.addi %c14_i32_10, %c11_i32 : i32
    %151 = arith.index_cast %150 : i32 to index
    %152 = memref.load %arg0[%151] : memref<36xi32, #tpu.memory_space<smem>>
    %153 = vector.broadcast %152 : i32 to vector<8x8xi32>
    %154 = arith.cmpi eq, %0, %153 : vector<8x8xi32>
    %155 = vector.broadcast %149 : i32 to vector<8x8xi32>
    %156 = arith.cmpi eq, %1, %155 : vector<8x8xi32>
    %157 = arith.andi %154, %156 : vector<8x8xi1>
    %158 = arith.extui %157 : vector<8x8xi1> to vector<8x8xi32>
    %159 = arith.sitofp %158 : vector<8x8xi32> to vector<8x8xf32>
    %160 = arith.maximumf %147, %159 : vector<8x8xf32>
    %c12_i32 = arith.constant 12 : i32
    %161 = arith.index_cast %c12_i32 : i32 to index
    %162 = memref.load %arg0[%161] : memref<36xi32, #tpu.memory_space<smem>>
    %c14_i32_11 = arith.constant 14 : i32
    %163 = arith.addi %c14_i32_11, %c12_i32 : i32
    %164 = arith.index_cast %163 : i32 to index
    %165 = memref.load %arg0[%164] : memref<36xi32, #tpu.memory_space<smem>>
    %166 = vector.broadcast %165 : i32 to vector<8x8xi32>
    %167 = arith.cmpi eq, %0, %166 : vector<8x8xi32>
    %168 = vector.broadcast %162 : i32 to vector<8x8xi32>
    %169 = arith.cmpi eq, %1, %168 : vector<8x8xi32>
    %170 = arith.andi %167, %169 : vector<8x8xi1>
    %171 = arith.extui %170 : vector<8x8xi1> to vector<8x8xi32>
    %172 = arith.sitofp %171 : vector<8x8xi32> to vector<8x8xf32>
    %173 = arith.maximumf %160, %172 : vector<8x8xf32>
    %c13_i32 = arith.constant 13 : i32
    %174 = arith.index_cast %c13_i32 : i32 to index
    %175 = memref.load %arg0[%174] : memref<36xi32, #tpu.memory_space<smem>>
    %c14_i32_12 = arith.constant 14 : i32
    %176 = arith.addi %c14_i32_12, %c13_i32 : i32
    %177 = arith.index_cast %176 : i32 to index
    %178 = memref.load %arg0[%177] : memref<36xi32, #tpu.memory_space<smem>>
    %179 = vector.broadcast %178 : i32 to vector<8x8xi32>
    %180 = arith.cmpi eq, %0, %179 : vector<8x8xi32>
    %181 = vector.broadcast %175 : i32 to vector<8x8xi32>
    %182 = arith.cmpi eq, %1, %181 : vector<8x8xi32>
    %183 = arith.andi %180, %182 : vector<8x8xi1>
    %184 = arith.extui %183 : vector<8x8xi1> to vector<8x8xi32>
    %185 = arith.sitofp %184 : vector<8x8xi32> to vector<8x8xf32>
    %186 = arith.maximumf %173, %185 : vector<8x8xf32>
    %c14_i32_13 = arith.constant 14 : i32
    %187 = tpu.iota {dimensions = array<i32: 0>} : vector<2x8xi32>
    %188 = tpu.iota {dimensions = array<i32: 1>} : vector<2x8xi32>
    %cst = arith.constant -1.000000e+30 : f32
    %189 = vector.broadcast %cst : f32 to vector<2x8xf32>
    %c0_i32_14 = arith.constant 0 : i32
    %c28_i32 = arith.constant 28 : i32
    %190 = arith.addi %c28_i32, %c0_i32_14 : i32
    %191 = arith.index_cast %190 : i32 to index
    %192 = memref.load %arg0[%191] : memref<36xi32, #tpu.memory_space<smem>>
    %193 = vector.broadcast %192 : i32 to vector<2x8xi32>
    %194 = arith.cmpi eq, %187, %193 : vector<2x8xi32>
    %195 = vector.broadcast %c0_i32_14 : i32 to vector<2x8xi32>
    %196 = arith.cmpi eq, %188, %195 : vector<2x8xi32>
    %197 = arith.andi %194, %196 : vector<2x8xi1>
    %cst_15 = arith.constant 0.000000e+00 : f32
    %198 = vector.broadcast %cst_15 : f32 to vector<2x8xf32>
    %199 = arith.select %197, %198, %189 : vector<2x8xi1>, vector<2x8xf32>
    %c1_i32_16 = arith.constant 1 : i32
    %c28_i32_17 = arith.constant 28 : i32
    %200 = arith.addi %c28_i32_17, %c1_i32_16 : i32
    %201 = arith.index_cast %200 : i32 to index
    %202 = memref.load %arg0[%201] : memref<36xi32, #tpu.memory_space<smem>>
    %203 = vector.broadcast %202 : i32 to vector<2x8xi32>
    %204 = arith.cmpi eq, %187, %203 : vector<2x8xi32>
    %205 = vector.broadcast %c1_i32_16 : i32 to vector<2x8xi32>
    %206 = arith.cmpi eq, %188, %205 : vector<2x8xi32>
    %207 = arith.andi %204, %206 : vector<2x8xi1>
    %cst_18 = arith.constant 0.000000e+00 : f32
    %208 = vector.broadcast %cst_18 : f32 to vector<2x8xf32>
    %209 = arith.select %207, %208, %199 : vector<2x8xi1>, vector<2x8xf32>
    %c2_i32_19 = arith.constant 2 : i32
    %c28_i32_20 = arith.constant 28 : i32
    %210 = arith.addi %c28_i32_20, %c2_i32_19 : i32
    %211 = arith.index_cast %210 : i32 to index
    %212 = memref.load %arg0[%211] : memref<36xi32, #tpu.memory_space<smem>>
    %213 = vector.broadcast %212 : i32 to vector<2x8xi32>
    %214 = arith.cmpi eq, %187, %213 : vector<2x8xi32>
    %215 = vector.broadcast %c2_i32_19 : i32 to vector<2x8xi32>
    %216 = arith.cmpi eq, %188, %215 : vector<2x8xi32>
    %217 = arith.andi %214, %216 : vector<2x8xi1>
    %cst_21 = arith.constant 0.000000e+00 : f32
    %218 = vector.broadcast %cst_21 : f32 to vector<2x8xf32>
    %219 = arith.select %217, %218, %209 : vector<2x8xi1>, vector<2x8xf32>
    %c3_i32_22 = arith.constant 3 : i32
    %c28_i32_23 = arith.constant 28 : i32
    %220 = arith.addi %c28_i32_23, %c3_i32_22 : i32
    %221 = arith.index_cast %220 : i32 to index
    %222 = memref.load %arg0[%221] : memref<36xi32, #tpu.memory_space<smem>>
    %223 = vector.broadcast %222 : i32 to vector<2x8xi32>
    %224 = arith.cmpi eq, %187, %223 : vector<2x8xi32>
    %225 = vector.broadcast %c3_i32_22 : i32 to vector<2x8xi32>
    %226 = arith.cmpi eq, %188, %225 : vector<2x8xi32>
    %227 = arith.andi %224, %226 : vector<2x8xi1>
    %cst_24 = arith.constant 0.000000e+00 : f32
    %228 = vector.broadcast %cst_24 : f32 to vector<2x8xf32>
    %229 = arith.select %227, %228, %219 : vector<2x8xi1>, vector<2x8xf32>
    %c4_i32_25 = arith.constant 4 : i32
    %c28_i32_26 = arith.constant 28 : i32
    %230 = arith.addi %c28_i32_26, %c4_i32_25 : i32
    %231 = arith.index_cast %230 : i32 to index
    %232 = memref.load %arg0[%231] : memref<36xi32, #tpu.memory_space<smem>>
    %233 = vector.broadcast %232 : i32 to vector<2x8xi32>
    %234 = arith.cmpi eq, %187, %233 : vector<2x8xi32>
    %235 = vector.broadcast %c4_i32_25 : i32 to vector<2x8xi32>
    %236 = arith.cmpi eq, %188, %235 : vector<2x8xi32>
    %237 = arith.andi %234, %236 : vector<2x8xi1>
    %cst_27 = arith.constant 0.000000e+00 : f32
    %238 = vector.broadcast %cst_27 : f32 to vector<2x8xf32>
    %239 = arith.select %237, %238, %229 : vector<2x8xi1>, vector<2x8xf32>
    %c5_i32_28 = arith.constant 5 : i32
    %c28_i32_29 = arith.constant 28 : i32
    %240 = arith.addi %c28_i32_29, %c5_i32_28 : i32
    %241 = arith.index_cast %240 : i32 to index
    %242 = memref.load %arg0[%241] : memref<36xi32, #tpu.memory_space<smem>>
    %243 = vector.broadcast %242 : i32 to vector<2x8xi32>
    %244 = arith.cmpi eq, %187, %243 : vector<2x8xi32>
    %245 = vector.broadcast %c5_i32_28 : i32 to vector<2x8xi32>
    %246 = arith.cmpi eq, %188, %245 : vector<2x8xi32>
    %247 = arith.andi %244, %246 : vector<2x8xi1>
    %cst_30 = arith.constant 0.000000e+00 : f32
    %248 = vector.broadcast %cst_30 : f32 to vector<2x8xf32>
    %249 = arith.select %247, %248, %239 : vector<2x8xi1>, vector<2x8xf32>
    %c6_i32_31 = arith.constant 6 : i32
    %c28_i32_32 = arith.constant 28 : i32
    %250 = arith.addi %c28_i32_32, %c6_i32_31 : i32
    %251 = arith.index_cast %250 : i32 to index
    %252 = memref.load %arg0[%251] : memref<36xi32, #tpu.memory_space<smem>>
    %253 = vector.broadcast %252 : i32 to vector<2x8xi32>
    %254 = arith.cmpi eq, %187, %253 : vector<2x8xi32>
    %255 = vector.broadcast %c6_i32_31 : i32 to vector<2x8xi32>
    %256 = arith.cmpi eq, %188, %255 : vector<2x8xi32>
    %257 = arith.andi %254, %256 : vector<2x8xi1>
    %cst_33 = arith.constant 0.000000e+00 : f32
    %258 = vector.broadcast %cst_33 : f32 to vector<2x8xf32>
    %259 = arith.select %257, %258, %249 : vector<2x8xi1>, vector<2x8xf32>
    %c7_i32_34 = arith.constant 7 : i32
    %c28_i32_35 = arith.constant 28 : i32
    %260 = arith.addi %c28_i32_35, %c7_i32_34 : i32
    %261 = arith.index_cast %260 : i32 to index
    %262 = memref.load %arg0[%261] : memref<36xi32, #tpu.memory_space<smem>>
    %263 = vector.broadcast %262 : i32 to vector<2x8xi32>
    %264 = arith.cmpi eq, %187, %263 : vector<2x8xi32>
    %265 = vector.broadcast %c7_i32_34 : i32 to vector<2x8xi32>
    %266 = arith.cmpi eq, %188, %265 : vector<2x8xi32>
    %267 = arith.andi %264, %266 : vector<2x8xi1>
    %cst_36 = arith.constant 0.000000e+00 : f32
    %268 = vector.broadcast %cst_36 : f32 to vector<2x8xf32>
    %269 = arith.select %267, %268, %259 : vector<2x8xi1>, vector<2x8xf32>
    %c8_i32_37 = arith.constant 8 : i32
    %c0 = arith.constant 0 : index
    %c0_38 = arith.constant 0 : index
    %270 = vector.load %arg3[%c0, %c0_38] : memref<26x16xf32, #tpu.memory_space<vmem>>, vector<26x16xf32>
    %271 = vector.extract_strided_slice %270 {offsets = [0, 0], sizes = [8, 16], strides = [1, 1]} : vector<26x16xf32> to vector<8x16xf32>
    %272 = vector.extract_strided_slice %270 {offsets = [8, 0], sizes = [1, 16], strides = [1, 1]} : vector<26x16xf32> to vector<1x16xf32>
    %273 = vector.extract_strided_slice %270 {offsets = [9, 0], sizes = [16, 2], strides = [1, 1]} : vector<26x16xf32> to vector<16x2xf32>
    %274 = vector.extract_strided_slice %270 {offsets = [25, 0], sizes = [1, 2], strides = [1, 1]} : vector<26x16xf32> to vector<1x2xf32>
    %c0_39 = arith.constant 0 : index
    %c0_40 = arith.constant 0 : index
    %275 = vector.load %arg2[%c0_39, %c0_40] : memref<8x8xf32, #tpu.memory_space<vmem>>, vector<8x8xf32>
    %cst_41 = arith.constant dense<0.000000e+00> : vector<8x16xf32>
    %276 = tpu.matmul %275, %271, %cst_41 {dimension_numbers = #tpu.dot_dimension_numbers<[1], [0], [0], [1], [0, 0, 1, 1], [], []>} : vector<8x8xf32>, vector<8x16xf32>, vector<8x16xf32> -> vector<8x16xf32>
    %277 = vector.broadcast %272 : vector<1x16xf32> to vector<8x16xf32>
    %278 = arith.addf %276, %277 : vector<8x16xf32>
    %cst_42 = arith.constant 0.000000e+00 : f32
    %279 = vector.broadcast %cst_42 : f32 to vector<8x16xf32>
    %280 = arith.maximumf %278, %279 : vector<8x16xf32>
    %c0_43 = arith.constant 0 : index
    %281 = memref.load %arg1[%c0_43] : memref<2xf32, #tpu.memory_space<smem>>
    %282 = arith.mulf %280, %280 : vector<8x16xf32>
    %cst_44 = arith.constant dense<0.000000e+00> : vector<8xf32>
    %283 = vector.multi_reduction <add>, %282, %cst_44 [1] : vector<8x16xf32> to vector<8xf32>
    %284 = vector.shape_cast %283 : vector<8xf32> to vector<8x1xf32>
    %cst_45 = arith.constant 1.000000e-24 : f32
    %285 = vector.broadcast %cst_45 : f32 to vector<8x1xf32>
    %286 = arith.maximumf %284, %285 : vector<8x1xf32>
    %287 = math.rsqrt %286 : vector<8x1xf32>
    %288 = vector.broadcast %287 : vector<8x1xf32> to vector<8x16xf32>
    %289 = arith.mulf %280, %288 : vector<8x16xf32>
    %290 = vector.broadcast %281 : f32 to vector<8x16xf32>
    %291 = arith.mulf %289, %290 : vector<8x16xf32>
    "tpu.trace_start"() <{level = 10 : i32, message = "if,jf->ij"}> : () -> ()
    %cst_46 = arith.constant dense<0.000000e+00> : vector<8x8xf32>
    %292 = tpu.matmul %291, %289, %cst_46 {dimension_numbers = #tpu.dot_dimension_numbers<[1], [1], [0], [0], [0, 0, 1, 0], [], []>} : vector<8x16xf32>, vector<8x16xf32>, vector<8x8xf32> -> vector<8x8xf32>
    "tpu.trace_stop"() : () -> ()
    %cst_47 = arith.constant dense<0xFF800000> : vector<8xf32>
    %293 = vector.multi_reduction <maximumf>, %292, %cst_47 [1] : vector<8x8xf32> to vector<8xf32>
    %294 = vector.shape_cast %293 : vector<8xf32> to vector<8x1xf32>
    %295 = vector.broadcast %294 : vector<8x1xf32> to vector<8x8xf32>
    %296 = arith.subf %292, %295 : vector<8x8xf32>
    %297 = math.exp %296 : vector<8x8xf32>
    %298 = arith.mulf %297, %186 : vector<8x8xf32>
    %cst_48 = arith.constant dense<0.000000e+00> : vector<8xf32>
    %299 = vector.multi_reduction <add>, %298, %cst_48 [1] : vector<8x8xf32> to vector<8xf32>
    %300 = vector.shape_cast %299 : vector<8xf32> to vector<8x1xf32>
    %cst_49 = arith.constant 1.000000e-30 : f32
    %301 = vector.broadcast %cst_49 : f32 to vector<8x1xf32>
    %302 = arith.addf %300, %301 : vector<8x1xf32>
    %303 = tpu.reciprocal %302 {approx = true} : vector<8x1xf32> -> vector<8x1xf32>
    %304 = vector.broadcast %303 : vector<8x1xf32> to vector<8x8xf32>
    %305 = arith.mulf %298, %304 : vector<8x8xf32>
    %cst_50 = arith.constant dense<0.000000e+00> : vector<8x16xf32>
    %306 = tpu.matmul %305, %280, %cst_50 {dimension_numbers = #tpu.dot_dimension_numbers<[1], [0], [0], [1], [0, 0, 1, 1], [], []>} : vector<8x8xf32>, vector<8x16xf32>, vector<8x16xf32> -> vector<8x16xf32>
    %c1 = arith.constant 1 : index
    %307 = memref.load %arg1[%c1] : memref<2xf32, #tpu.memory_space<smem>>
    %308 = arith.mulf %306, %306 : vector<8x16xf32>
    %cst_51 = arith.constant dense<0.000000e+00> : vector<8xf32>
    %309 = vector.multi_reduction <add>, %308, %cst_51 [1] : vector<8x16xf32> to vector<8xf32>
    %310 = vector.shape_cast %309 : vector<8xf32> to vector<8x1xf32>
    %cst_52 = arith.constant 1.000000e-24 : f32
    %311 = vector.broadcast %cst_52 : f32 to vector<8x1xf32>
    %312 = arith.maximumf %310, %311 : vector<8x1xf32>
    %313 = math.rsqrt %312 : vector<8x1xf32>
    %314 = vector.broadcast %313 : vector<8x1xf32> to vector<8x16xf32>
    %315 = arith.mulf %306, %314 : vector<8x16xf32>
    %316 = vector.broadcast %307 : f32 to vector<8x16xf32>
    %317 = arith.mulf %315, %316 : vector<8x16xf32>
    "tpu.trace_start"() <{level = 10 : i32, message = "if,jf->ij"}> : () -> ()
    %cst_53 = arith.constant dense<0.000000e+00> : vector<8x8xf32>
    %318 = tpu.matmul %317, %315, %cst_53 {dimension_numbers = #tpu.dot_dimension_numbers<[1], [1], [0], [0], [0, 0, 1, 0], [], []>} : vector<8x16xf32>, vector<8x16xf32>, vector<8x8xf32> -> vector<8x8xf32>
    "tpu.trace_stop"() : () -> ()
    %cst_54 = arith.constant dense<0xFF800000> : vector<8xf32>
    %319 = vector.multi_reduction <maximumf>, %318, %cst_54 [1] : vector<8x8xf32> to vector<8xf32>
    %320 = vector.shape_cast %319 : vector<8xf32> to vector<8x1xf32>
    %321 = vector.broadcast %320 : vector<8x1xf32> to vector<8x8xf32>
    %322 = arith.subf %318, %321 : vector<8x8xf32>
    %323 = math.exp %322 : vector<8x8xf32>
    %324 = arith.mulf %323, %186 : vector<8x8xf32>
    %cst_55 = arith.constant dense<0.000000e+00> : vector<8xf32>
    %325 = vector.multi_reduction <add>, %324, %cst_55 [1] : vector<8x8xf32> to vector<8xf32>
    %326 = vector.shape_cast %325 : vector<8xf32> to vector<8x1xf32>
    %cst_56 = arith.constant 1.000000e-30 : f32
    %327 = vector.broadcast %cst_56 : f32 to vector<8x1xf32>
    %328 = arith.addf %326, %327 : vector<8x1xf32>
    %329 = tpu.reciprocal %328 {approx = true} : vector<8x1xf32> -> vector<8x1xf32>
    %330 = vector.broadcast %329 : vector<8x1xf32> to vector<8x8xf32>
    %331 = arith.mulf %324, %330 : vector<8x8xf32>
    %cst_57 = arith.constant dense<0.000000e+00> : vector<8x16xf32>
    %332 = tpu.matmul %331, %306, %cst_57 {dimension_numbers = #tpu.dot_dimension_numbers<[1], [0], [0], [1], [0, 0, 1, 1], [], []>} : vector<8x8xf32>, vector<8x16xf32>, vector<8x16xf32> -> vector<8x16xf32>
    %333 = vector.shape_cast %332 : vector<8x16xf32> to vector<1x8x16xf32>
    %334 = vector.shape_cast %269 : vector<2x8xf32> to vector<2x8x1xf32>
    %335 = vector.broadcast %333 : vector<1x8x16xf32> to vector<2x8x16xf32>
    %336 = vector.broadcast %334 : vector<2x8x1xf32> to vector<2x8x16xf32>
    %337 = arith.addf %335, %336 : vector<2x8x16xf32>
    %cst_58 = arith.constant dense<0xFF800000> : vector<2x16xf32>
    %338 = vector.multi_reduction <maximumf>, %337, %cst_58 [1] : vector<2x8x16xf32> to vector<2x16xf32>
    %cst_59 = arith.constant dense<0.000000e+00> : vector<2x2xf32>
    %339 = tpu.matmul %338, %273, %cst_59 {dimension_numbers = #tpu.dot_dimension_numbers<[1], [0], [0], [1], [0, 0, 1, 1], [], []>} : vector<2x16xf32>, vector<16x2xf32>, vector<2x2xf32> -> vector<2x2xf32>
    %340 = vector.broadcast %274 : vector<1x2xf32> to vector<2x2xf32>
    %341 = arith.addf %339, %340 : vector<2x2xf32>
    %cst_60 = arith.constant dense<0xFF800000> : vector<2xf32>
    %342 = vector.multi_reduction <maximumf>, %341, %cst_60 [1] : vector<2x2xf32> to vector<2xf32>
    %343 = vector.shape_cast %342 : vector<2xf32> to vector<2x1xf32>
    %344 = vector.broadcast %343 : vector<2x1xf32> to vector<2x2xf32>
    %345 = arith.subf %341, %344 : vector<2x2xf32>
    %346 = math.exp %345 : vector<2x2xf32>
    %cst_61 = arith.constant dense<0.000000e+00> : vector<2xf32>
    %347 = vector.multi_reduction <add>, %346, %cst_61 [1] : vector<2x2xf32> to vector<2xf32>
    %348 = vector.shape_cast %347 : vector<2xf32> to vector<2x1xf32>
    %349 = math.log %348 : vector<2x1xf32>
    %350 = vector.broadcast %349 : vector<2x1xf32> to vector<2x2xf32>
    %351 = arith.subf %345, %350 : vector<2x2xf32>
    %c0_62 = arith.constant 0 : index
    %c0_63 = arith.constant 0 : index
    %352 = vector.load %arg4[%c0_62, %c0_63] : memref<2x2xf32, #tpu.memory_space<vmem>>, vector<2x2xf32>
    tpu.vector_store %arg4[%c0_62, %c0_63], %351 {strides = array<i32>} : memref<2x2xf32, #tpu.memory_space<vmem>>, vector<2x2xf32>,
    return
  }
}

</mosaic_0001>

<llo_original>
// kernel: tpu_custom_call.1
$region0: #{tpu_custom_call.1}
  #allocation0 [shape = 'u32[]', space=smem, size = 0x4, offset = 0x4, fixed_abs, tag = 'smem constant byte address 0x4 - core index']
  #allocation1 [shape = 'u32[144,128]{1,0:T(1,128)}', space=vmem, size = 0x12000, scoped, tag = 'internal scratch']
  %s0 = inlined_call_operand.vmem [shape: s32[36], index: 0, kind: input, shape index: {}]
  %s1 = inlined_call_operand.vmem [shape: f32[2], index: 1, kind: input, shape index: {}]
  %s2 = inlined_call_operand.vmem [shape: f32[8,8], index: 2, kind: input, shape index: {}]
  %s3 = inlined_call_operand.vmem [shape: f32[26,16], index: 3, kind: input, shape index: {}]
  %s4 = inlined_call_operand.hbm [shape: f32[2,2], index: 4, kind: output, shape index: {}]
  %s5 = sld [smem:[#allocation0]]
  $region34: #{tpu_custom_call.1} parent=0
    _
  %s7 = ssub.s32 1, %s5
  %s8 = scalar_select 0, %s7, %s5
  $region1: #{tpu_custom_call.1} parent=0
    #allocation2 [shape = 'u8[512]{0}', space=smem, size = 0x200, scoped, tag = 'input window, operand 0, single buffered']
    #allocation3 [shape = 's32[1]{0}', space=sflag, size = 0x4, scoped, tag = 'scoped memory for tpu_custom_call.1']
    #allocation4 [shape = 's32[1]{0}', space=sflag, size = 0x4, scoped, tag = 'scoped memory for tpu_custom_call.1']
    #allocation5 [shape = 'u8[512]{0}', space=smem, size = 0x200, scoped, tag = 'input window, operand 1, single buffered']
    #allocation6 [shape = 's32[1]{0}', space=sflag, size = 0x4, scoped, tag = 'scoped memory for tpu_custom_call.1']
    #allocation7 [shape = 'u8[1024]{0}', space=vmem, size = 0x400, scoped, tag = 'output window, operand 0, single buffered']
    %9 = vsyncpa [#allocation4], 0
    %10 = vsyncpa [#allocation6], 0
    %11 = vsyncpa [#allocation3], 0
    // Predicated region
    $region2: #{tpu_custom_call.1} parent=1 // pred_check
      _
    $region3: #{tpu_custom_call.1} parent=1 // pred_check_branch
      %13 = sbr.rel (0) target = $region5
    $region4: #{tpu_custom_call.1} parent=1 // pred_region
      %s15 = ssub.s32 16, 16
      %16 = vsyncadd [#allocation4], %s15
      %s18 = sshll.u32 %s0, 4
      %s19 = int_to_ptr.vmem [resolvable:$true] %s18
      %21 = dma.vmem_to_smem %s19, 16, [#allocation2], [#allocation4]
    $region5: #{tpu_custom_call.1} parent=1 // pred_fallthru
      _
    // Predicated region
    $region6: #{tpu_custom_call.1} parent=1 // pred_check
      _
    $region7: #{tpu_custom_call.1} parent=1 // pred_check_branch
      %23 = sbr.rel (0) target = $region9
    $region8: #{tpu_custom_call.1} parent=1 // pred_region
      %s25 = ssub.s32 16, 16
      %26 = vsyncadd [#allocation6], %s25
      %s28 = sshll.u32 %s1, 4
      %s29 = int_to_ptr.vmem [resolvable:$true] %s28
      %31 = dma.vmem_to_smem %s29, 16, [#allocation5], [#allocation6]
    $region9: #{tpu_custom_call.1} parent=1 // pred_fallthru
      _
    // Predicated region
    $region10: #{tpu_custom_call.1} parent=1 // pred_check
      _
    $region11: #{tpu_custom_call.1} parent=1 // pred_check_branch
      %33 = sbr.rel (0) target = $region13
    $region12: #{tpu_custom_call.1} parent=1 // pred_region
      _
    $region13: #{tpu_custom_call.1} parent=1 // pred_fallthru
      _
    // Predicated region
    $region14: #{tpu_custom_call.1} parent=1 // pred_check
      _
    $region15: #{tpu_custom_call.1} parent=1 // pred_check_branch
      %35 = sbr.rel (0) target = $region17
    $region16: #{tpu_custom_call.1} parent=1 // pred_region
      _
    $region17: #{tpu_custom_call.1} parent=1 // pred_fallthru
      _
    // Predicated region
    $region18: #{tpu_custom_call.1} parent=1 // pred_check
      _
    $region19: #{tpu_custom_call.1} parent=1 // pred_check_branch
      %37 = sbr.rel (0) target = $region21
    $region20: #{tpu_custom_call.1} parent=1 // pred_region
      %38 = dma.done [#allocation4], 16
    $region21: #{tpu_custom_call.1} parent=1 // pred_fallthru
      _
    // Predicated region
    $region22: #{tpu_custom_call.1} parent=1 // pred_check
      _
    $region23: #{tpu_custom_call.1} parent=1 // pred_check_branch
      %40 = sbr.rel (0) target = $region25
    $region24: #{tpu_custom_call.1} parent=1 // pred_region
      %41 = dma.done [#allocation6], 16
    $region25: #{tpu_custom_call.1} parent=1 // pred_fallthru
      _
    %42 = sfence
    %v43 = vlaneseq
    %v44 = vshrl.u32 %v43, 7
    %v45 = vlaneseq
    %v46 = vand.u32 %v45, 127
    %vm47 = vcmp.eq.s32.totalorder %v44, %v46
    %v48 = vsel %vm47, 1, 0
    %v49 = vcvt.s32.f32 %v48
    %s50 = sld [smem:[#allocation2]]
    %s51 = sld [smem:[#allocation2 + $0xe]]
    %v52 = vstv %s51
    %vm53 = vcmp.eq.s32.totalorder %v44, %v52
    %v54 = vstv %s50
    %vm55 = vcmp.eq.s32.totalorder %v46, %v54
    %vm56 = vmand %vm53, %vm55
    %v57 = vsel %vm56, 1, 0
    %v58 = vcvt.s32.f32 %v57
    %v59 = vmax.f32 %v49, %v58
    %s60 = sld [smem:[#allocation2 + $0x1]]
    %s61 = sld [smem:[#allocation2 + $0xf]]
    %v62 = vstv %s61
    %vm63 = vcmp.eq.s32.totalorder %v44, %v62
    %v64 = vstv %s60
    %vm65 = vcmp.eq.s32.totalorder %v46, %v64
    %vm66 = vmand %vm63, %vm65
    %v67 = vsel %vm66, 1, 0
    %v68 = vcvt.s32.f32 %v67
    %v69 = vmax.f32 %v59, %v68
    %s70 = sld [smem:[#allocation2 + $0x2]]
    %s71 = sld [smem:[#allocation2 + $0x10]]
    %v72 = vstv %s71
    %vm73 = vcmp.eq.s32.totalorder %v44, %v72
    %v74 = vstv %s70
    %vm75 = vcmp.eq.s32.totalorder %v46, %v74
    %vm76 = vmand %vm73, %vm75
    %v77 = vsel %vm76, 1, 0
    %v78 = vcvt.s32.f32 %v77
    %v79 = vmax.f32 %v69, %v78
    %s80 = sld [smem:[#allocation2 + $0x3]]
    %s81 = sld [smem:[#allocation2 + $0x11]]
    %v82 = vstv %s81
    %vm83 = vcmp.eq.s32.totalorder %v44, %v82
    %v84 = vstv %s80
    %vm85 = vcmp.eq.s32.totalorder %v46, %v84
    %vm86 = vmand %vm83, %vm85
    %v87 = vsel %vm86, 1, 0
    %v88 = vcvt.s32.f32 %v87
    %v89 = vmax.f32 %v79, %v88
    %s90 = sld [smem:[#allocation2 + $0x4]]
    %s91 = sld [smem:[#allocation2 + $0x12]]
    %v92 = vstv %s91
    %vm93 = vcmp.eq.s32.totalorder %v44, %v92
    %v94 = vstv %s90
    %vm95 = vcmp.eq.s32.totalorder %v46, %v94
    %vm96 = vmand %vm93, %vm95
    %v97 = vsel %vm96, 1, 0
    %v98 = vcvt.s32.f32 %v97
    %v99 = vmax.f32 %v89, %v98
    %s100 = sld [smem:[#allocation2 + $0x5]]
    %s101 = sld [smem:[#allocation2 + $0x13]]
    %v102 = vstv %s101
    %vm103 = vcmp.eq.s32.totalorder %v44, %v102
    %v104 = vstv %s100
    %vm105 = vcmp.eq.s32.totalorder %v46, %v104
    %vm106 = vmand %vm103, %vm105
    %v107 = vsel %vm106, 1, 0
    %v108 = vcvt.s32.f32 %v107
    %v109 = vmax.f32 %v99, %v108
    %s110 = sld [smem:[#allocation2 + $0x6]]
    %s111 = sld [smem:[#allocation2 + $0x14]]
    %v112 = vstv %s111
    %vm113 = vcmp.eq.s32.totalorder %v44, %v112
    %v114 = vstv %s110
    %vm115 = vcmp.eq.s32.totalorder %v46, %v114
    %vm116 = vmand %vm113, %vm115
    %v117 = vsel %vm116, 1, 0
    %v118 = vcvt.s32.f32 %v117
    %v119 = vmax.f32 %v109, %v118
    %s120 = sld [smem:[#allocation2 + $0x7]]
    %s121 = sld [smem:[#allocation2 + $0x15]]
    %v122 = vstv %s121
    %vm123 = vcmp.eq.s32.totalorder %v44, %v122
    %v124 = vstv %s120
    %vm125 = vcmp.eq.s32.totalorder %v46, %v124
    %vm126 = vmand %vm123, %vm125
    %v127 = vsel %vm126, 1, 0
    %v128 = vcvt.s32.f32 %v127
    %v129 = vmax.f32 %v119, %v128
    %s130 = sld [smem:[#allocation2 + $0x8]]
    %s131 = sld [smem:[#allocation2 + $0x16]]
    %v132 = vstv %s131
    %vm133 = vcmp.eq.s32.totalorder %v44, %v132
    %v134 = vstv %s130
    %vm135 = vcmp.eq.s32.totalorder %v46, %v134
    %vm136 = vmand %vm133, %vm135
    %v137 = vsel %vm136, 1, 0
    %v138 = vcvt.s32.f32 %v137
    %v139 = vmax.f32 %v129, %v138
    %s140 = sld [smem:[#allocation2 + $0x9]]
    %s141 = sld [smem:[#allocation2 + $0x17]]
    %v142 = vstv %s141
    %vm143 = vcmp.eq.s32.totalorder %v44, %v142
    %v144 = vstv %s140
    %vm145 = vcmp.eq.s32.totalorder %v46, %v144
    %vm146 = vmand %vm143, %vm145
    %v147 = vsel %vm146, 1, 0
    %v148 = vcvt.s32.f32 %v147
    %v149 = vmax.f32 %v139, %v148
    %s150 = sld [smem:[#allocation2 + $0xa]]
    %s151 = sld [smem:[#allocation2 + $0x18]]
    %v152 = vstv %s151
    %vm153 = vcmp.eq.s32.totalorder %v44, %v152
    %v154 = vstv %s150
    %vm155 = vcmp.eq.s32.totalorder %v46, %v154
    %vm156 = vmand %vm153, %vm155
    %v157 = vsel %vm156, 1, 0
    %v158 = vcvt.s32.f32 %v157
    %v159 = vmax.f32 %v149, %v158
    %s160 = sld [smem:[#allocation2 + $0xb]]
    %s161 = sld [smem:[#allocation2 + $0x19]]
    %v162 = vstv %s161
    %vm163 = vcmp.eq.s32.totalorder %v44, %v162
    %v164 = vstv %s160
    %vm165 = vcmp.eq.s32.totalorder %v46, %v164
    %vm166 = vmand %vm163, %vm165
    %v167 = vsel %vm166, 1, 0
    %v168 = vcvt.s32.f32 %v167
    %v169 = vmax.f32 %v159, %v168
    %s170 = sld [smem:[#allocation2 + $0xc]]
    %s171 = sld [smem:[#allocation2 + $0x1a]]
    %v172 = vstv %s171
    %vm173 = vcmp.eq.s32.totalorder %v44, %v172
    %v174 = vstv %s170
    %vm175 = vcmp.eq.s32.totalorder %v46, %v174
    %vm176 = vmand %vm173, %vm175
    %v177 = vsel %vm176, 1, 0
    %v178 = vcvt.s32.f32 %v177
    %v179 = vmax.f32 %v169, %v178
    %s180 = sld [smem:[#allocation2 + $0xd]]
    %s181 = sld [smem:[#allocation2 + $0x1b]]
    %v182 = vstv %s181
    %vm183 = vcmp.eq.s32.totalorder %v44, %v182
    %v184 = vstv %s180
    %vm185 = vcmp.eq.s32.totalorder %v46, %v184
    %vm186 = vmand %vm183, %vm185
    %v187 = vsel %vm186, 1, 0
    %v188 = vcvt.s32.f32 %v187
    %v189 = vmax.f32 %v179, %v188
    %s190 = sld [smem:[#allocation2 + $0x1c]]
    %v191 = vstv %s190
    %vm192 = vcmp.eq.s32.totalorder %v44, %v191
    %vm193 = vcmp.eq.s32.totalorder %v46, 0
    %vm194 = vmand %vm192, %vm193
    %v195 = vsel %vm194, 0.0, -1e+30
    %s196 = sld [smem:[#allocation2 + $0x1d]]
    %v197 = vstv %s196
    %vm198 = vcmp.eq.s32.totalorder %v44, %v197
    %vm199 = vcmp.eq.s32.totalorder %v46, 1
    %vm200 = vmand %vm198, %vm199
    %v201 = vsel %vm200, 0.0, %v195
    %s202 = sld [smem:[#allocation2 + $0x1e]]
    %v203 = vstv %s202
    %vm204 = vcmp.eq.s32.totalorder %v44, %v203
    %vm205 = vcmp.eq.s32.totalorder %v46, 2
    %vm206 = vmand %vm204, %vm205
    %v207 = vsel %vm206, 0.0, %v201
    %s208 = sld [smem:[#allocation2 + $0x1f]]
    %v209 = vstv %s208
    %vm210 = vcmp.eq.s32.totalorder %v44, %v209
    %vm211 = vcmp.eq.s32.totalorder %v46, 3
    %vm212 = vmand %vm210, %vm211
    %v213 = vsel %vm212, 0.0, %v207
    %s214 = sld [smem:[#allocation2 + $0x20]]
    %v215 = vstv %s214
    %vm216 = vcmp.eq.s32.totalorder %v44, %v215
    %vm217 = vcmp.eq.s32.totalorder %v46, 4
    %vm218 = vmand %vm216, %vm217
    %v219 = vsel %vm218, 0.0, %v213
    %s220 = sld [smem:[#allocation2 + $0x21]]
    %v221 = vstv %s220
    %vm222 = vcmp.eq.s32.totalorder %v44, %v221
    %vm223 = vcmp.eq.s32.totalorder %v46, 5
    %vm224 = vmand %vm222, %vm223
    %v225 = vsel %vm224, 0.0, %v219
    %s226 = sld [smem:[#allocation2 + $0x22]]
    %v227 = vstv %s226
    %vm228 = vcmp.eq.s32.totalorder %v44, %v227
    %vm229 = vcmp.eq.s32.totalorder %v46, 6
    %vm230 = vmand %vm228, %vm229
    %v231 = vsel %vm230, 0.0, %v225
    %s232 = sld [smem:[#allocation2 + $0x23]]
    %v233 = vstv %s232
    %vm234 = vcmp.eq.s32.totalorder %v44, %v233
    %vm235 = vcmp.eq.s32.totalorder %v46, 7
    %vm236 = vmand %vm234, %vm235
    %v237 = vsel %vm236, 0.0, %v231
    %v238 = vld [vmem:[%s3] sm:$0xff]
    %v239 = vld [vmem:[%s3 + $0x8] sm:$0xff]
    %v240 = vld [vmem:[%s3 + $0x10] sm:$0xff]
    %v241 = vld [vmem:[%s3 + $0x18] sm:$0x3]
    %v242 = vld [vmem:[%s2] sm:$0xff]
    %v243 = vlaneseq
    %v244 = vshrl.u32 %v243, 7
    %v245 = vsub.s32 0, %v244
    %v246 = vrot.slane %v239, %v245
    %vm247 = vcmask 64512
    %v249 = vsel %vm247, %v242, 0
    %251 = vmatprep.subr.mxu0 0.0
    %252 = vmatpush1.msra.mxu0 0.0
    %253 = vmatprep.subr.mxu0 0.0
    %254 = vmatpush1.msra.mxu0 0.0
    %255 = vmatprep.subr.mxu0 0.0
    %256 = vmatpush1.msra.mxu0 0.0
    %257 = vmatprep.subr.mxu0 0.0
    %258 = vmatpush1.msra.mxu0 0.0
    %259 = vmatprep.subr.mxu0 0.0
    %260 = vmatpush1.msra.mxu0 0.0
    %261 = vmatprep.subr.mxu0 0.0
    %262 = vmatpush1.msra.mxu0 0.0
    %263 = vmatprep.subr.mxu0 0.0
    %264 = vmatpush1.msra.mxu0 0.0
    %265 = vmatprep.subr.mxu0 0.0
    %266 = vmatpush1.msra.mxu0 0.0
    %267 = vmatprep.subr.mxu0 0.0
    %268 = vmatpush1.msra.mxu0 0.0
    %269 = vmatprep.subr.mxu0 0.0
    %270 = vmatpush1.msra.mxu0 0.0
    %271 = vmatprep.subr.mxu0 0.0
    %272 = vmatpush1.msra.mxu0 0.0
    %273 = vmatprep.subr.mxu0 0.0
    %274 = vmatpush1.msra.mxu0 0.0
    %275 = vmatprep.subr.mxu0 0.0
    %276 = vmatpush1.msra.mxu0 0.0
    %277 = vmatprep.subr.mxu0 0.0
    %278 = vmatpush1.msra.mxu0 0.0
    %279 = vmatprep.subr.mxu0 0.0
    %280 = vmatpush1.msra.mxu0 0.0
    %281 = vmatprep.subr.mxu0 0.0
    %282 = vmatpush1.msra.mxu0 %v238
    %283 = vmatprep.subr.mxu0 0.0
    %284 = vmatpush2.msra.mxu0 0.0
    %285 = vmatprep.subr.mxu0 0.0
    %286 = vmatpush2.msra.mxu0 0.0
    %287 = vmatprep.subr.mxu0 0.0
    %288 = vmatpush2.msra.mxu0 0.0
    %289 = vmatprep.subr.mxu0 0.0
    %290 = vmatpush2.msra.mxu0 0.0
    %291 = vmatprep.subr.mxu0 0.0
    %292 = vmatpush2.msra.mxu0 0.0
    %293 = vmatprep.subr.mxu0 0.0
    %294 = vmatpush2.msra.mxu0 0.0
    %295 = vmatprep.subr.mxu0 0.0
    %296 = vmatpush2.msra.mxu0 0.0
    %297 = vmatprep.subr.mxu0 0.0
    %298 = vmatpush2.msra.mxu0 0.0
    %299 = vmatprep.subr.mxu0 0.0
    %300 = vmatpush2.msra.mxu0 0.0
    %301 = vmatprep.subr.mxu0 0.0
    %302 = vmatpush2.msra.mxu0 0.0
    %303 = vmatprep.subr.mxu0 0.0
    %304 = vmatpush2.msra.mxu0 0.0
    %305 = vmatprep.subr.mxu0 0.0
    %306 = vmatpush2.msra.mxu0 0.0
    %307 = vmatprep.subr.mxu0 0.0
    %308 = vmatpush2.msra.mxu0 0.0
    %309 = vmatprep.subr.mxu0 0.0
    %310 = vmatpush2.msra.mxu0 0.0
    %311 = vmatprep.subr.mxu0 0.0
    %312 = vmatpush2.msra.mxu0 0.0
    %313 = vmatprep.subr.mxu0 0.0
    %314 = vmatpush2.msra.mxu0 0.0
    %315 = vmatprep.mubr.f32.mxu0 0.0
    %316 = vmatmul.mubr.f32.gmra.mxu0 %v249
    %v317 = vpop.f32.mrf.mxu0
    %v318 = vadd.f32 %v246, %v317
    %v319 = vpop.f32.mrf.mxu0
    %320 = vdwg.mxu0
    %v321 = vmax.f32 %v318, 0.0
    %s322 = sld [smem:[#allocation5]]
    %v323 = vmul.f32 %v321, %v321
    %vm324 = vcmask 130048
    %v325 = vsel %vm324, %v323, 0.0
    %326 = vadd.xlane.f32.xlu0 %v325
    %v327 = vpop.xlane.xlu0 %326
    %v328 = vmax.f32 %v327, 1e-24
    %v329 = vrsqrt.pop %v328
    %v330 = vmul.f32 %v321, %v329
    %v331 = vstv %s322
    %v332 = vmul.f32 %v330, %v331
    %v334 = vsel %vm324, %v332, 0
    %v337 = vsel %vm324, %v330, 0
    %339 = vmatprep.subr.mxu0 0.0
    %340 = vmatpush1.xpose.msra.mxu0 0.0
    %341 = vmatprep.subr.mxu0 0.0
    %342 = vmatpush1.xpose.msra.mxu0 0.0
    %343 = vmatprep.subr.mxu0 0.0
    %344 = vmatpush1.xpose.msra.mxu0 0.0
    %345 = vmatprep.subr.mxu0 0.0
    %346 = vmatpush1.xpose.msra.mxu0 0.0
    %347 = vmatprep.subr.mxu0 0.0
    %348 = vmatpush1.xpose.msra.mxu0 0.0
    %349 = vmatprep.subr.mxu0 0.0
    %350 = vmatpush1.xpose.msra.mxu0 0.0
    %351 = vmatprep.subr.mxu0 0.0
    %352 = vmatpush1.xpose.msra.mxu0 0.0
    %353 = vmatprep.subr.mxu0 0.0
    %354 = vmatpush1.xpose.msra.mxu0 0.0
    %355 = vmatprep.subr.mxu0 0.0
    %356 = vmatpush1.xpose.msra.mxu0 0.0
    %357 = vmatprep.subr.mxu0 0.0
    %358 = vmatpush1.xpose.msra.mxu0 0.0
    %359 = vmatprep.subr.mxu0 0.0
    %360 = vmatpush1.xpose.msra.mxu0 0.0
    %361 = vmatprep.subr.mxu0 0.0
    %362 = vmatpush1.xpose.msra.mxu0 0.0
    %363 = vmatprep.subr.mxu0 0.0
    %364 = vmatpush1.xpose.msra.mxu0 0.0
    %365 = vmatprep.subr.mxu0 0.0
    %366 = vmatpush1.xpose.msra.mxu0 0.0
    %367 = vmatprep.subr.mxu0 0.0
    %368 = vmatpush1.xpose.msra.mxu0 0.0
    %369 = vmatprep.subr.mxu0 0.0
    %370 = vmatpush1.xpose.msra.mxu0 %v337
    %371 = vmatprep.subr.mxu0 0.0
    %372 = vmatpush2.xpose.msra.mxu0 0.0
    %373 = vmatprep.subr.mxu0 0.0
    %374 = vmatpush2.xpose.msra.mxu0 0.0
    %375 = vmatprep.subr.mxu0 0.0
    %376 = vmatpush2.xpose.msra.mxu0 0.0
    %377 = vmatprep.subr.mxu0 0.0
    %378 = vmatpush2.xpose.msra.mxu0 0.0
    %379 = vmatprep.subr.mxu0 0.0
    %380 = vmatpush2.xpose.msra.mxu0 0.0
    %381 = vmatprep.subr.mxu0 0.0
    %382 = vmatpush2.xpose.msra.mxu0 0.0
    %383 = vmatprep.subr.mxu0 0.0
    %384 = vmatpush2.xpose.msra.mxu0 0.0
    %385 = vmatprep.subr.mxu0 0.0
    %386 = vmatpush2.xpose.msra.mxu0 0.0
    %387 = vmatprep.subr.mxu0 0.0
    %388 = vmatpush2.xpose.msra.mxu0 0.0
    %389 = vmatprep.subr.mxu0 0.0
    %390 = vmatpush2.xpose.msra.mxu0 0.0
    %391 = vmatprep.subr.mxu0 0.0
    %392 = vmatpush2.xpose.msra.mxu0 0.0
    %393 = vmatprep.subr.mxu0 0.0
    %394 = vmatpush2.xpose.msra.mxu0 0.0
    %395 = vmatprep.subr.mxu0 0.0
    %396 = vmatpush2.xpose.msra.mxu0 0.0
    %397 = vmatprep.subr.mxu0 0.0
    %398 = vmatpush2.xpose.msra.mxu0 0.0
    %399 = vmatprep.subr.mxu0 0.0
    %400 = vmatpush2.xpose.msra.mxu0 0.0
    %401 = vmatprep.subr.mxu0 0.0
    %402 = vmatpush2.xpose.msra.mxu0 0.0
    %403 = vmatprep.mubr.f32.mxu0 0.0
    %404 = vmatmul.mubr.f32.gmra.mxu0 %v334
    %v405 = vpop.f32.mrf.mxu0
    %v406 = vadd.f32 0.0, %v405
    %v407 = vpop.f32.mrf.mxu0
    %408 = vdwg.mxu0
    %v409 = vsel %vm247, %v406, -inf
    %410 = vmax.xlane.f32.xlu0 %v409
    %v411 = vpop.xlane.xlu0 %410
    %v412 = vsub.f32 %v406, %v411
    %v413 = vmul.f32 %v412, 1.442695
    %v414 = vpow.pop %v413
    %v415 = vmul.f32 %v414, %v189
    %v416 = vsel %vm247, %v415, 0.0
    %417 = vadd.xlane.f32.xlu0 %v416
    %v418 = vpop.xlane.xlu0 %417
    %v419 = vadd.f32 %v418, 1e-30
    %v420 = vrcp.pop %v419
    %v421 = vmul.f32 %v415, %v420
    %v423 = vsel %vm247, %v421, 0
    %425 = vmatprep.subr.mxu0 0.0
    %426 = vmatpush1.msra.mxu0 0.0
    %427 = vmatprep.subr.mxu0 0.0
    %428 = vmatpush1.msra.mxu0 0.0
    %429 = vmatprep.subr.mxu0 0.0
    %430 = vmatpush1.msra.mxu0 0.0
    %431 = vmatprep.subr.mxu0 0.0
    %432 = vmatpush1.msra.mxu0 0.0
    %433 = vmatprep.subr.mxu0 0.0
    %434 = vmatpush1.msra.mxu0 0.0
    %435 = vmatprep.subr.mxu0 0.0
    %436 = vmatpush1.msra.mxu0 0.0
    %437 = vmatprep.subr.mxu0 0.0
    %438 = vmatpush1.msra.mxu0 0.0
    %439 = vmatprep.subr.mxu0 0.0
    %440 = vmatpush1.msra.mxu0 0.0
    %441 = vmatprep.subr.mxu0 0.0
    %442 = vmatpush1.msra.mxu0 0.0
    %443 = vmatprep.subr.mxu0 0.0
    %444 = vmatpush1.msra.mxu0 0.0
    %445 = vmatprep.subr.mxu0 0.0
    %446 = vmatpush1.msra.mxu0 0.0
    %447 = vmatprep.subr.mxu0 0.0
    %448 = vmatpush1.msra.mxu0 0.0
    %449 = vmatprep.subr.mxu0 0.0
    %450 = vmatpush1.msra.mxu0 0.0
    %451 = vmatprep.subr.mxu0 0.0
    %452 = vmatpush1.msra.mxu0 0.0
    %453 = vmatprep.subr.mxu0 0.0
    %454 = vmatpush1.msra.mxu0 0.0
    %455 = vmatprep.subr.mxu0 0.0
    %456 = vmatpush1.msra.mxu0 %v321
    %457 = vmatprep.subr.mxu0 0.0
    %458 = vmatpush2.msra.mxu0 0.0
    %459 = vmatprep.subr.mxu0 0.0
    %460 = vmatpush2.msra.mxu0 0.0
    %461 = vmatprep.subr.mxu0 0.0
    %462 = vmatpush2.msra.mxu0 0.0
    %463 = vmatprep.subr.mxu0 0.0
    %464 = vmatpush2.msra.mxu0 0.0
    %465 = vmatprep.subr.mxu0 0.0
    %466 = vmatpush2.msra.mxu0 0.0
    %467 = vmatprep.subr.mxu0 0.0
    %468 = vmatpush2.msra.mxu0 0.0
    %469 = vmatprep.subr.mxu0 0.0
    %470 = vmatpush2.msra.mxu0 0.0
    %471 = vmatprep.subr.mxu0 0.0
    %472 = vmatpush2.msra.mxu0 0.0
    %473 = vmatprep.subr.mxu0 0.0
    %474 = vmatpush2.msra.mxu0 0.0
    %475 = vmatprep.subr.mxu0 0.0
    %476 = vmatpush2.msra.mxu0 0.0
    %477 = vmatprep.subr.mxu0 0.0
    %478 = vmatpush2.msra.mxu0 0.0
    %479 = vmatprep.subr.mxu0 0.0
    %480 = vmatpush2.msra.mxu0 0.0
    %481 = vmatprep.subr.mxu0 0.0
    %482 = vmatpush2.msra.mxu0 0.0
    %483 = vmatprep.subr.mxu0 0.0
    %484 = vmatpush2.msra.mxu0 0.0
    %485 = vmatprep.subr.mxu0 0.0
    %486 = vmatpush2.msra.mxu0 0.0
    %487 = vmatprep.subr.mxu0 0.0
    %488 = vmatpush2.msra.mxu0 0.0
    %489 = vmatprep.mubr.f32.mxu0 0.0
    %490 = vmatmul.mubr.f32.gmra.mxu0 %v423
    %v491 = vpop.f32.mrf.mxu0
    %v492 = vadd.f32 0.0, %v491
    %v493 = vpop.f32.mrf.mxu0
    %494 = vdwg.mxu0
    %s495 = sld [smem:[#allocation5 + $0x1]]
    %v496 = vmul.f32 %v492, %v492
    %v497 = vsel %vm324, %v496, 0.0
    %498 = vadd.xlane.f32.xlu0 %v497
    %v499 = vpop.xlane.xlu0 %498
    %v500 = vmax.f32 %v499, 1e-24
    %v501 = vrsqrt.pop %v500
    %v502 = vmul.f32 %v492, %v501
    %v503 = vstv %s495
    %v504 = vmul.f32 %v502, %v503
    %v506 = vsel %vm324, %v504, 0
    %v509 = vsel %vm324, %v502, 0
    %511 = vmatprep.subr.mxu0 0.0
    %512 = vmatpush1.xpose.msra.mxu0 0.0
    %513 = vmatprep.subr.mxu0 0.0
    %514 = vmatpush1.xpose.msra.mxu0 0.0
    %515 = vmatprep.subr.mxu0 0.0
    %516 = vmatpush1.xpose.msra.mxu0 0.0
    %517 = vmatprep.subr.mxu0 0.0
    %518 = vmatpush1.xpose.msra.mxu0 0.0
    %519 = vmatprep.subr.mxu0 0.0
    %520 = vmatpush1.xpose.msra.mxu0 0.0
    %521 = vmatprep.subr.mxu0 0.0
    %522 = vmatpush1.xpose.msra.mxu0 0.0
    %523 = vmatprep.subr.mxu0 0.0
    %524 = vmatpush1.xpose.msra.mxu0 0.0
    %525 = vmatprep.subr.mxu0 0.0
    %526 = vmatpush1.xpose.msra.mxu0 0.0
    %527 = vmatprep.subr.mxu0 0.0
    %528 = vmatpush1.xpose.msra.mxu0 0.0
    %529 = vmatprep.subr.mxu0 0.0
    %530 = vmatpush1.xpose.msra.mxu0 0.0
    %531 = vmatprep.subr.mxu0 0.0
    %532 = vmatpush1.xpose.msra.mxu0 0.0
    %533 = vmatprep.subr.mxu0 0.0
    %534 = vmatpush1.xpose.msra.mxu0 0.0
    %535 = vmatprep.subr.mxu0 0.0
    %536 = vmatpush1.xpose.msra.mxu0 0.0
    %537 = vmatprep.subr.mxu0 0.0
    %538 = vmatpush1.xpose.msra.mxu0 0.0
    %539 = vmatprep.subr.mxu0 0.0
    %540 = vmatpush1.xpose.msra.mxu0 0.0
    %541 = vmatprep.subr.mxu0 0.0
    %542 = vmatpush1.xpose.msra.mxu0 %v509
    %543 = vmatprep.subr.mxu0 0.0
    %544 = vmatpush2.xpose.msra.mxu0 0.0
    %545 = vmatprep.subr.mxu0 0.0
    %546 = vmatpush2.xpose.msra.mxu0 0.0
    %547 = vmatprep.subr.mxu0 0.0
    %548 = vmatpush2.xpose.msra.mxu0 0.0
    %549 = vmatprep.subr.mxu0 0.0
    %550 = vmatpush2.xpose.msra.mxu0 0.0
    %551 = vmatprep.subr.mxu0 0.0
    %552 = vmatpush2.xpose.msra.mxu0 0.0
    %553 = vmatprep.subr.mxu0 0.0
    %554 = vmatpush2.xpose.msra.mxu0 0.0
    %555 = vmatprep.subr.mxu0 0.0
    %556 = vmatpush2.xpose.msra.mxu0 0.0
    %557 = vmatprep.subr.mxu0 0.0
    %558 = vmatpush2.xpose.msra.mxu0 0.0
    %559 = vmatprep.subr.mxu0 0.0
    %560 = vmatpush2.xpose.msra.mxu0 0.0
    %561 = vmatprep.subr.mxu0 0.0
    %562 = vmatpush2.xpose.msra.mxu0 0.0
    %563 = vmatprep.subr.mxu0 0.0
    %564 = vmatpush2.xpose.msra.mxu0 0.0
    %565 = vmatprep.subr.mxu0 0.0
    %566 = vmatpush2.xpose.msra.mxu0 0.0
    %567 = vmatprep.subr.mxu0 0.0
    %568 = vmatpush2.xpose.msra.mxu0 0.0
    %569 = vmatprep.subr.mxu0 0.0
    %570 = vmatpush2.xpose.msra.mxu0 0.0
    %571 = vmatprep.subr.mxu0 0.0
    %572 = vmatpush2.xpose.msra.mxu0 0.0
    %573 = vmatprep.subr.mxu0 0.0
    %574 = vmatpush2.xpose.msra.mxu0 0.0
    %575 = vmatprep.mubr.f32.mxu0 0.0
    %576 = vmatmul.mubr.f32.gmra.mxu0 %v506
    %v577 = vpop.f32.mrf.mxu0
    %v578 = vadd.f32 0.0, %v577
    %v579 = vpop.f32.mrf.mxu0
    %580 = vdwg.mxu0
    %v581 = vsel %vm247, %v578, -inf
    %582 = vmax.xlane.f32.xlu0 %v581
    %v583 = vpop.xlane.xlu0 %582
    %v584 = vsub.f32 %v578, %v583
    %v585 = vmul.f32 %v584, 1.442695
    %v586 = vpow.pop %v585
    %v587 = vmul.f32 %v586, %v189
    %v588 = vsel %vm247, %v587, 0.0
    %589 = vadd.xlane.f32.xlu0 %v588
    %v590 = vpop.xlane.xlu0 %589
    %v591 = vadd.f32 %v590, 1e-30
    %v592 = vrcp.pop %v591
    %v593 = vmul.f32 %v587, %v592
    %v595 = vsel %vm247, %v593, 0
    %597 = vmatprep.subr.mxu0 0.0
    %598 = vmatpush1.msra.mxu0 0.0
    %599 = vmatprep.subr.mxu0 0.0
    %600 = vmatpush1.msra.mxu0 0.0
    %601 = vmatprep.subr.mxu0 0.0
    %602 = vmatpush1.msra.mxu0 0.0
    %603 = vmatprep.subr.mxu0 0.0
    %604 = vmatpush1.msra.mxu0 0.0
    %605 = vmatprep.subr.mxu0 0.0
    %606 = vmatpush1.msra.mxu0 0.0
    %607 = vmatprep.subr.mxu0 0.0
    %608 = vmatpush1.msra.mxu0 0.0
    %609 = vmatprep.subr.mxu0 0.0
    %610 = vmatpush1.msra.mxu0 0.0
    %611 = vmatprep.subr.mxu0 0.0
    %612 = vmatpush1.msra.mxu0 0.0
    %613 = vmatprep.subr.mxu0 0.0
    %614 = vmatpush1.msra.mxu0 0.0
    %615 = vmatprep.subr.mxu0 0.0
    %616 = vmatpush1.msra.mxu0 0.0
    %617 = vmatprep.subr.mxu0 0.0
    %618 = vmatpush1.msra.mxu0 0.0
    %619 = vmatprep.subr.mxu0 0.0
    %620 = vmatpush1.msra.mxu0 0.0
    %621 = vmatprep.subr.mxu0 0.0
    %622 = vmatpush1.msra.mxu0 0.0
    %623 = vmatprep.subr.mxu0 0.0
    %624 = vmatpush1.msra.mxu0 0.0
    %625 = vmatprep.subr.mxu0 0.0
    %626 = vmatpush1.msra.mxu0 0.0
    %627 = vmatprep.subr.mxu0 0.0
    %628 = vmatpush1.msra.mxu0 %v492
    %629 = vmatprep.subr.mxu0 0.0
    %630 = vmatpush2.msra.mxu0 0.0
    %631 = vmatprep.subr.mxu0 0.0
    %632 = vmatpush2.msra.mxu0 0.0
    %633 = vmatprep.subr.mxu0 0.0
    %634 = vmatpush2.msra.mxu0 0.0
    %635 = vmatprep.subr.mxu0 0.0
    %636 = vmatpush2.msra.mxu0 0.0
    %637 = vmatprep.subr.mxu0 0.0
    %638 = vmatpush2.msra.mxu0 0.0
    %639 = vmatprep.subr.mxu0 0.0
    %640 = vmatpush2.msra.mxu0 0.0
    %641 = vmatprep.subr.mxu0 0.0
    %642 = vmatpush2.msra.mxu0 0.0
    %643 = vmatprep.subr.mxu0 0.0
    %644 = vmatpush2.msra.mxu0 0.0
    %645 = vmatprep.subr.mxu0 0.0
    %646 = vmatpush2.msra.mxu0 0.0
    %647 = vmatprep.subr.mxu0 0.0
    %648 = vmatpush2.msra.mxu0 0.0
    %649 = vmatprep.subr.mxu0 0.0
    %650 = vmatpush2.msra.mxu0 0.0
    %651 = vmatprep.subr.mxu0 0.0
    %652 = vmatpush2.msra.mxu0 0.0
    %653 = vmatprep.subr.mxu0 0.0
    %654 = vmatpush2.msra.mxu0 0.0
    %655 = vmatprep.subr.mxu0 0.0
    %656 = vmatpush2.msra.mxu0 0.0
    %657 = vmatprep.subr.mxu0 0.0
    %658 = vmatpush2.msra.mxu0 0.0
    %659 = vmatprep.subr.mxu0 0.0
    %660 = vmatpush2.msra.mxu0 0.0
    %661 = vmatprep.mubr.f32.mxu0 0.0
    %662 = vmatmul.mubr.f32.gmra.mxu0 %v595
    %v663 = vpop.f32.mrf.mxu0
    %v664 = vadd.f32 0.0, %v663
    %v665 = vpop.f32.mrf.mxu0
    %666 = vdwg.mxu0
    %v667 = vlaneseq
    %v668 = vshrl.u32 %v667, 7
    %v669 = vsub.s32 0, %v668
    %v670 = vrot.slane %v237, %v669
    %672 = vbcast.lane.b32.xlu0 %v670, 256
    %v673 = vpop.permute.xlu0 %672
    %v674 = vlaneseq
    %v675 = vshrl.u32 %v674, 7
    %v676 = vsub.s32 1, %v675
    %v677 = vrot.slane %v237, %v676
    %679 = vbcast.lane.b32.xlu0 %v677, 256
    %v680 = vpop.permute.xlu0 %679
    %v681 = vadd.f32 %v664, %v673
    %v682 = vadd.f32 %v664, %v680
    %v683 = vsel %vm324, %v681, -inf
    %v684 = vrot.slane %v683, 4
    %v685 = vmax.f32 %v683, %v684
    %v686 = vrot.slane %v685, 2
    %v687 = vmax.f32 %v685, %v686
    %v688 = vrot.slane %v687, 1
    %v689 = vmax.f32 %v687, %v688
    %v690 = vsel %vm324, %v682, -inf
    %v691 = vrot.slane %v690, 4
    %v692 = vmax.f32 %v690, %v691
    %v693 = vrot.slane %v692, 2
    %v694 = vmax.f32 %v692, %v693
    %v695 = vrot.slane %v694, 1
    %v696 = vmax.f32 %v694, %v695
    %v697 = vlaneseq
    %v698 = vshrl.u32 %v697, 7
    %v699 = vsub.s32 1, %v698
    %v700 = vrot.slane %v241, %v699
    %vm703 = vcmask 1041409
    %v704 = vsel %vm703, %v696, %v689
    %vm708 = vcmask 1046528
    %v709 = vrot.slane %v239, 1
    %v710 = vrot.slane %v240, 1
    %v711 = vsel %vm708, %v709, %v710
    %v712 = vrot.slane %v241, 1
    %v713 = vsel %vm708, %v710, %v712
    %v716 = vsel %vm324, %v704, 0
    %718 = vmatprep.subr.mxu0 0.0
    %719 = vmatpush1.msra.mxu0 0.0
    %720 = vmatprep.subr.mxu0 0.0
    %721 = vmatpush1.msra.mxu0 0.0
    %722 = vmatprep.subr.mxu0 0.0
    %723 = vmatpush1.msra.mxu0 0.0
    %724 = vmatprep.subr.mxu0 0.0
    %725 = vmatpush1.msra.mxu0 0.0
    %726 = vmatprep.subr.mxu0 0.0
    %727 = vmatpush1.msra.mxu0 0.0
    %728 = vmatprep.subr.mxu0 0.0
    %729 = vmatpush1.msra.mxu0 0.0
    %730 = vmatprep.subr.mxu0 0.0
    %731 = vmatpush1.msra.mxu0 0.0
    %732 = vmatprep.subr.mxu0 0.0
    %733 = vmatpush1.msra.mxu0 0.0
    %734 = vmatprep.subr.mxu0 0.0
    %735 = vmatpush1.msra.mxu0 0.0
    %736 = vmatprep.subr.mxu0 0.0
    %737 = vmatpush1.msra.mxu0 0.0
    %738 = vmatprep.subr.mxu0 0.0
    %739 = vmatpush1.msra.mxu0 0.0
    %740 = vmatprep.subr.mxu0 0.0
    %741 = vmatpush1.msra.mxu0 0.0
    %742 = vmatprep.subr.mxu0 0.0
    %743 = vmatpush1.msra.mxu0 0.0
    %744 = vmatprep.subr.mxu0 0.0
    %745 = vmatpush1.msra.mxu0 0.0
    %746 = vmatprep.subr.mxu0 0.0
    %747 = vmatpush1.msra.mxu0 %v713
    %748 = vmatprep.subr.mxu0 0.0
    %749 = vmatpush1.msra.mxu0 %v711
    %750 = vmatprep.subr.mxu0 0.0
    %751 = vmatpush2.msra.mxu0 0.0
    %752 = vmatprep.subr.mxu0 0.0
    %753 = vmatpush2.msra.mxu0 0.0
    %754 = vmatprep.subr.mxu0 0.0
    %755 = vmatpush2.msra.mxu0 0.0
    %756 = vmatprep.subr.mxu0 0.0
    %757 = vmatpush2.msra.mxu0 0.0
    %758 = vmatprep.subr.mxu0 0.0
    %759 = vmatpush2.msra.mxu0 0.0
    %760 = vmatprep.subr.mxu0 0.0
    %761 = vmatpush2.msra.mxu0 0.0
    %762 = vmatprep.subr.mxu0 0.0
    %763 = vmatpush2.msra.mxu0 0.0
    %764 = vmatprep.subr.mxu0 0.0
    %765 = vmatpush2.msra.mxu0 0.0
    %766 = vmatprep.subr.mxu0 0.0
    %767 = vmatpush2.msra.mxu0 0.0
    %768 = vmatprep.subr.mxu0 0.0
    %769 = vmatpush2.msra.mxu0 0.0
    %770 = vmatprep.subr.mxu0 0.0
    %771 = vmatpush2.msra.mxu0 0.0
    %772 = vmatprep.subr.mxu0 0.0
    %773 = vmatpush2.msra.mxu0 0.0
    %774 = vmatprep.subr.mxu0 0.0
    %775 = vmatpush2.msra.mxu0 0.0
    %776 = vmatprep.subr.mxu0 0.0
    %777 = vmatpush2.msra.mxu0 0.0
    %778 = vmatprep.subr.mxu0 0.0
    %779 = vmatpush2.msra.mxu0 0.0
    %780 = vmatprep.subr.mxu0 0.0
    %781 = vmatpush2.msra.mxu0 0.0
    %782 = vmatprep.mubr.f32.mxu0 0.0
    %783 = vmatmul.mubr.f32.gmra.mxu0 %v716
    %v784 = vpop.f32.mrf.mxu0
    %v785 = vadd.f32 %v700, %v784
    %v786 = vpop.f32.mrf.mxu0
    %787 = vdwg.mxu0
    %vm788 = vcmask 9216
    %v789 = vsel %vm788, %v785, -inf
    %790 = vmax.xlane.f32.xlu0 %v789
    %v791 = vpop.xlane.xlu0 %790
    %v792 = vsub.f32 %v785, %v791
    %v793 = vmul.f32 %v792, 1.442695
    %v794 = vpow.pop %v793
    %v795 = vsel %vm788, %v794, 0.0
    %796 = vadd.xlane.f32.xlu0 %v795
    %v797 = vpop.xlane.xlu0 %796
    %v798 = vlog2.pop %v797
    %v799 = vmul.f32 %v798, 0.6931472
    %v800 = vsub.f32 %v792, %v799
    %801 = vst.msk [vmem:[#allocation7] sm:$0x3] %vm788, %v800
    // Predicated region
    $region26: #{tpu_custom_call.1} parent=1 // pred_check
      _
    $region27: #{tpu_custom_call.1} parent=1 // pred_check_branch
      %803 = sbr.rel (0) target = $region29
    $region28: #{tpu_custom_call.1} parent=1 // pred_region
      %s805 = ssub.s32 32, 32
      %806 = vsyncadd [#allocation3], %s805
      %s808 = sshll.u32 [#allocation7], 4
      %s809 = int_to_ptr.vmem [resolvable:$true] %s808
      %811 = dma.vmem_to_hbm [thread:$0]  %s809, 32, %s4, [#allocation3]
    $region29: #{tpu_custom_call.1} parent=1 // pred_fallthru
      _
    // Predicated region
    $region30: #{tpu_custom_call.1} parent=1 // pred_check
      _
    $region31: #{tpu_custom_call.1} parent=1 // pred_check_branch
      %813 = sbr.rel (0) target = $region33
    $region32: #{tpu_custom_call.1} parent=1 // pred_region
      %814 = dma.done [#allocation3], 32
    $region33: #{tpu_custom_call.1} parent=1 // pred_fallthru
      _
    %815 = vsyncpa [#allocation3], 1
    %816 = vsyncpa [#allocation4], 1
    %817 = vsyncpa [#allocation6], 1

</llo_original>
